<compile_context>
chip_gen: v7x
topology: tpu7x:2x2x1
jax: 0.10.0
libtpu: 0.0.40
codegen_flags: <defaults>
</compile_context>

<pallas_src>
import functools

import jax
import jax.numpy as jnp
from jax import lax
from jax.experimental import pallas as pl
from jax.experimental.pallas import tpu as pltpu


# --------------------------- chip-adaptive config ---------------------------

@functools.lru_cache(maxsize=1)
def _tpu_config():
    """Per-generation tiling / VMEM / EUP configuration."""
    kind = ""
    try:
        kind = jax.devices()[0].device_kind.lower()
    except Exception:
        pass
    vmem_cap = None
    try:
        vmem_cap = int(getattr(pltpu.get_tpu_info(),
                               "vmem_capacity_bytes", 0)) or None
    except Exception:
        vmem_cap = None
    if vmem_cap is None:
        if "v7" in kind:
            vmem_cap = 64 << 20                      # v7x: 64 MiB / TC
        elif ("v6" in kind) or ("v5" in kind) or ("v4" in kind):
            vmem_cap = 128 << 20
        else:
            vmem_cap = 64 << 20                      # conservative default
    # Leave >=16 MiB headroom for Mosaic internal scratch (logits tile etc.).
    vmem_limit = max(32 << 20, min(vmem_cap - (16 << 20), 100 << 20))
    big_vmem = vmem_cap >= (100 << 20)               # v5e / v6e class
    bf16_exp = ("v6" in kind) or ("v7" in kind)      # bf16 EUP path
    is_v5e = ("v5e" in kind) or ("v5 lite" in kind) or ("v5lite" in kind)
    return {
        "vmem_limit": vmem_limit,
        "attn_tq": 512,
        "attn_tkv": 1024 if big_vmem else 512,       # keep <=512 on v7x
        "bf16_exp": bf16_exp,
        "extra_kv_buffering": is_v5e,                # lowest HBM BW -> 3 bufs
    }


def _tile(dim, preferred, align):
    """Largest aligned tile <= preferred that divides dim; else the full dim
    (a full-extent block is always a legal BlockSpec).
    NOTE: the full-dim fallback can exceed the VMEM budget for very large,
    awkward extents; acceptable for the shapes this module sees."""
    if dim <= preferred:
        return dim
    t = (preferred // align) * align
    while t >= align:
        if dim % t == 0:
            return t
        t -= align
    return dim


def _maybe_buffered_spec(shape, index_map, extra_buffering):
    """K/V BlockSpec; on v5e request 3-deep pipelining to hide copy latency."""
    if extra_buffering and hasattr(pl, "Buffered"):
        try:
            return pl.BlockSpec(shape, index_map, pipeline_mode=pl.Buffered(3))
        except TypeError:
            pass
    return pl.BlockSpec(shape, index_map)


# --------------------------- projection kernels ----------------------------

def _matmul_bias_kernel(x_ref, w_ref, b_ref, o_ref, acc_ref):
    # bf16 x @ bf16 w (already [K, N]) with f32 accumulation; bias on epilogue.
    @pl.when(pl.program_id(2) == 0)
    def _():
        acc_ref[...] = jnp.zeros_like(acc_ref)

    acc_ref[...] += jnp.dot(x_ref[...], w_ref[...],
                            preferred_element_type=jnp.float32)

    @pl.when(pl.program_id(2) == pl.num_programs(2) - 1)
    def _():
        o_ref[...] = (acc_ref[...] + b_ref[...].astype(jnp.float32)
                      ).astype(o_ref.dtype)


def _matmul_bias_residual_kernel(x_ref, w_ref, b_ref, r_ref, o_ref, acc_ref):
    # Same as above, plus residual add (dropout_p == 0 -> dropout_add is add).
    @pl.when(pl.program_id(2) == 0)
    def _():
        acc_ref[...] = jnp.zeros_like(acc_ref)

    acc_ref[...] += jnp.dot(x_ref[...], w_ref[...],
                            preferred_element_type=jnp.float32)

    @pl.when(pl.program_id(2) == pl.num_programs(2) - 1)
    def _():
        o_ref[...] = (acc_ref[...] + b_ref[...].astype(jnp.float32)
                      + r_ref[...].astype(jnp.float32)).astype(o_ref.dtype)


def _linear_call(kernel, operands, M, N, K, out_dtype,
                 tm=512, tn=1024, tk=512, extra_specs=()):
    cfg = _tpu_config()
    tm = _tile(M, tm, 16)
    tn = _tile(N, tn, 128)
    tk = _tile(K, tk, 128)
    grid = (M // tm, N // tn, K // tk)
    in_specs = [
        pl.BlockSpec((tm, tk), lambda i, j, k: (i, k)),   # x
        pl.BlockSpec((tk, tn), lambda i, j, k: (k, j)),   # w  (pre-transposed)
        pl.BlockSpec((1, tn), lambda i, j, k: (0, j)),    # bias
    ] + list(extra_specs(tm, tn) if callable(extra_specs) else extra_specs)
    return pl.pallas_call(
        kernel,
        out_shape=jax.ShapeDtypeStruct((M, N), out_dtype),
        grid=grid,
        in_specs=in_specs,
        out_specs=pl.BlockSpec((tm, tn), lambda i, j, k: (i, j)),
        scratch_shapes=[pltpu.VMEM((tm, tn), jnp.float32)],
        compiler_params=pltpu.CompilerParams(
            dimension_semantics=("parallel", "parallel", "arbitrary"),
            vmem_limit_bytes=cfg["vmem_limit"]),
    )(*operands)


def linear(x_bf16, w_kn_bf16, bias_f32, out_dtype):
    M, K = x_bf16.shape
    _, N = w_kn_bf16.shape
    return _linear_call(
        _matmul_bias_kernel,
        (x_bf16, w_kn_bf16, bias_f32.reshape(1, N).astype(jnp.float32)),
        M, N, K, out_dtype)


def linear_residual(x_bf16, w_kn_bf16, bias_f32, residual, out_dtype):
    M, K = x_bf16.shape
    _, N = w_kn_bf16.shape
    return _linear_call(
        _matmul_bias_residual_kernel,
        (x_bf16, w_kn_bf16, bias_f32.reshape(1, N).astype(jnp.float32),
         residual),
        M, N, K, out_dtype,
        extra_specs=lambda tm, tn: [pl.BlockSpec((tm, tn),
                                                 lambda i, j, k: (i, j))])


# --------------------------- flash attention kernel ------------------------

def _build_causal_schedule(n_q, n_kv, tq, tkv):
    """Flatten (qi, ki) into one triangular axis: only blocks that are not
    fully masked by causality become grid steps (kv innermost per q-tile)."""
    qi_list, ki_list = [], []
    for qi in range(n_q):
        last_ki = min(n_kv - 1, ((qi + 1) * tq - 1) // tkv)
        for ki in range(last_ki + 1):
            qi_list.append(qi)
            ki_list.append(ki)
    return (jnp.asarray(qi_list, jnp.int32), jnp.asarray(ki_list, jnp.int32))


def _flash_alibi_kernel(qi_ref, ki_ref, q_ref, k_ref, v_ref, o_ref,
                        m_sc, l_sc, acc_sc, *, tq, tkv, bf16_exp):
    # Grid = (B, NH, n_steps); one non-fully-masked (q-tile, kv-tile) of one
    # head per step.  softmax_scale = 1: the key is already offset/scaled.
    t = pl.program_id(2)
    qi = qi_ref[t]
    ki = ki_ref[t]
    q_start = qi * tq
    k_start = ki * tkv

    @pl.when(ki == 0)
    def _init():
        m_sc[...] = jnp.full_like(m_sc, -jnp.inf)
        l_sc[...] = jnp.zeros_like(l_sc)
        acc_sc[...] = jnp.zeros_like(acc_sc)

    def process(apply_mask):
        q = q_ref[...]                                        # [tq, D]  bf16
        k = k_ref[...]                                        # [tkv, D] bf16
        s = lax.dot_general(q, k, (((1,), (1,)), ((), ())),
                            preferred_element_type=jnp.float32)   # [tq, tkv]
        if apply_mask:
            rows = q_start + lax.broadcasted_iota(jnp.int32, (tq, tkv), 0)
            cols = k_start + lax.broadcasted_iota(jnp.int32, (tq, tkv), 1)
            s = jnp.where(cols <= rows, s, -1e30)
        m_prev = m_sc[...]
        m_new = jnp.maximum(m_prev, jnp.max(s, axis=-1, keepdims=True))
        alpha = jnp.exp(m_prev - m_new)                       # f32 [tq,1]
        if bf16_exp:
            # bf16 EUP path (v6e/v7x): mask/max/subtract in f32, exp in bf16,
            # p fed straight to the PV matmul (no extra cast for the MXU).
            p = jnp.exp((s - m_new).astype(jnp.bfloat16))
            row_sum = jnp.sum(p.astype(jnp.float32), axis=-1, keepdims=True)
            p_pv = p
        else:
            # f32 exp (v5e has no bf16 EUP).
            p = jnp.exp(s - m_new)
            row_sum = jnp.sum(p, axis=-1, keepdims=True)
            p_pv = p.astype(v_ref.dtype)
        l_sc[...] = alpha * l_sc[...] + row_sum
        acc_sc[...] = alpha * acc_sc[...] + jnp.dot(
            p_pv, v_ref[...], preferred_element_type=jnp.float32)
        m_sc[...] = m_new

    # Fully-masked blocks never appear in the schedule; only the diagonal
    # (or tkv>tq overhanging) blocks need the causal mask.
    needs_mask = (k_start + (tkv - 1)) > q_start

    @pl.when(needs_mask)
    def _diag_block():
        process(apply_mask=True)

    @pl.when(jnp.logical_not(needs_mask))
    def _full_block():
        process(apply_mask=False)

    last_ki = ((qi + 1) * tq - 1) // tkv

    @pl.when(ki == last_ki)
    def _finalize():
        inv_l = pl.reciprocal(l_sc[...], approx=True)
        o_ref[...] = (acc_sc[...] * inv_l).astype(o_ref.dtype)


def flash_attention_alibi(fused_qkv, offset_k, *, num_heads, head_dim,
                          tq=None, tkv=None):
    """fused_qkv: [B, S, 3*hidden] bf16 (Bloom head layout NH x 3 x D on the
    feature axis), offset_k: [B, S, hidden] bf16.  Returns [B, S, hidden]."""
    cfg = _tpu_config()
    B, S, _ = fused_qkv.shape
    NH, D = num_heads, head_dim
    hidden = NH * D
    tq = _tile(S, tq or cfg["attn_tq"], 16)
    tkv = _tile(S, tkv or cfg["attn_tkv"], 16)
    n_q, n_kv = S // tq, S // tkv

    # Triangular schedule (scalar-prefetched into SMEM): skipped causal blocks
    # cost nothing, not even a grid step.
    qi_arr, ki_arr = _build_causal_schedule(n_q, n_kv, tq, tkv)
    n_steps = int(qi_arr.shape[0])
    grid = (B, NH, n_steps)

    def q_map(b, h, t, qi_ref, ki_ref):
        return (b, qi_ref[t], h * 3)        # fused feature axis: (NH, 3, D)

    def k_map(b, h, t, qi_ref, ki_ref):
        return (b, ki_ref[t], h)

    def v_map(b, h, t, qi_ref, ki_ref):
        return (b, ki_ref[t], h * 3 + 2)

    def o_map(b, h, t, qi_ref, ki_ref):
        return (b, qi_ref[t], h)            # lane-dense [B, S, hidden] output

    kernel = functools.partial(_flash_alibi_kernel, tq=tq, tkv=tkv,
                               bf16_exp=cfg["bf16_exp"])
    return pl.pallas_call(
        kernel,
        out_shape=jax.ShapeDtypeStruct((B, S, hidden), fused_qkv.dtype),
        grid_spec=pltpu.PrefetchScalarGridSpec(
            num_scalar_prefetch=2,
            grid=grid,
            in_specs=[
                pl.BlockSpec((None, tq, D), q_map),      # Q from fused QKV
                _maybe_buffered_spec((None, tkv, D), k_map,
                                     cfg["extra_kv_buffering"]),  # offset K
                _maybe_buffered_spec((None, tkv, D), v_map,
                                     cfg["extra_kv_buffering"]),  # V from QKV
            ],
            out_specs=pl.BlockSpec((None, tq, D), o_map),
            scratch_shapes=[
                pltpu.VMEM((tq, 1), jnp.float32),        # m (running max)
                pltpu.VMEM((tq, 1), jnp.float32),        # l (running denom)
                pltpu.VMEM((tq, D), jnp.float32),        # acc
            ]),
        compiler_params=pltpu.CompilerParams(
            dimension_semantics=("parallel", "parallel", "arbitrary"),
            vmem_limit_bytes=cfg["vmem_limit"]),
    )(qi_arr, ki_arr, fused_qkv, offset_k, fused_qkv)


# ------------------------------- forward -----------------------------------

def prepare_params(params, half=jnp.bfloat16):
    """One-time parameter preparation (hoisted out of forward): weight
    transpose + cast so each forward doesn't pay weight-sized HBM round trips."""
    p = dict(params)
    p["w_qkv_t"] = jnp.asarray(params["w_qkv"]).T.astype(half)    # [H, 3H]
    p["w_dense_t"] = jnp.asarray(params["w_dense"]).T.astype(half)  # [H, H]
    p["b_qkv_f32"] = jnp.asarray(params["b_qkv"], jnp.float32)
    p["b_dense_f32"] = jnp.asarray(params["b_dense"], jnp.float32)
    return p


def flash_attention_wrapper_with_alibi_forward(params, hidden_states, residual,
                                               alibi):
    """Mirrors FlashAttentionWrapperWithAlibi.forward (layer_past=None,
    use_cache=False, pretraining_tp=1, dropout_p=0)."""
    if "w_qkv_t" not in params:
        params = prepare_params(params)

    B, S, hidden = hidden_states.shape
    NH = params["num_heads"]
    D = hidden // NH
    # TODO(synk): for D < 128 pack several heads per lane-block instead of
    # asserting; real Bloom uses D == 128.
    assert D % 128 == 0, "head_dim must be a multiple of 128 (lane-dense)"
    inv_norm_factor = float(params["inv_norm_factor"])
    beta = float(params["beta"])

    # TODO(synk): torch .half() (fp16) mapped to bfloat16 for TPU friendliness.
    half = jnp.bfloat16

    # fused QKV projection (tiled bf16 Pallas matmul), output kept in bf16
    x2d = hidden_states.reshape(B * S, hidden).astype(half)
    fused = linear(x2d, params["w_qkv_t"], params["b_qkv_f32"],
                   out_dtype=half)                                # [B*S, 3H]
    fused3 = fused.reshape(B, S, 3 * hidden)
    fused5 = fused.reshape(B, S, NH, 3, D)        # Bloom _split_heads layout

    # ALiBi-via-pinv key offset.  torch.linalg.pinv (batched SVD) has no
    # Pallas equivalent -> plain JAX; offset_k fold is fused into this pass.
    q_bnsd = jnp.transpose(fused5[..., 0, :], (0, 2, 1, 3)).astype(jnp.float32)
    pinv_q = jnp.linalg.pinv(q_bnsd)                              # [B,NH,D,S]
    alibi4 = alibi.reshape(B, NH, 1, S).astype(jnp.float32)       # [B,NH,1,S]
    adj_bsnd = jnp.transpose(pinv_q * alibi4, (0, 3, 1, 2))       # [B,S,NH,D]
    k_bsnd = fused5[..., 1, :].astype(jnp.float32)                # [B,S,NH,D]
    offset_k = (inv_norm_factor * k_bsnd + beta * adj_bsnd
                ).astype(half).reshape(B, S, hidden)              # [B,S,hidden]

    # tiled causal flash attention; Q/V read directly from fused QKV, output
    # written directly into the [B, S, hidden] layout (no transposes).
    ctx = flash_attention_alibi(fused3, offset_k,
                                num_heads=NH, head_dim=D)         # bf16

    # dense projection + dropout_add (p=0 -> residual add), one tiled kernel.
    # Residual streamed as bf16 (review: epilogue is memory-bound); f32
    # accumulate inside the kernel, f32 output.
    out = linear_residual(ctx.reshape(B * S, hidden), params["w_dense_t"],
                          params["b_dense_f32"],
                          residual.reshape(B * S, hidden).astype(half),
                          out_dtype=jnp.float32)
    output_tensor = out.reshape(B, S, hidden)
    present = None                                                # use_cache=False
    return output_tensor, present


# --------------------------------- main -------------------------------------

if __name__ == "__main__":
    B, S, NH, D = 2, 16, 2, 128
    hidden = NH * D

    key = jax.random.PRNGKey(0)
    k1, k2, k3, k4, k5, k6 = jax.random.split(key, 6)

    params = {
        "w_qkv": 0.05 * jax.random.normal(k1, (3 * hidden, hidden), jnp.float32),
        "b_qkv": 0.01 * jax.random.normal(k2, (3 * hidden,), jnp.float32),
        "w_dense": 0.05 * jax.random.normal(k3, (hidden, hidden), jnp.float32),
        "b_dense": 0.01 * jax.random.normal(k4, (hidden,), jnp.float32),
        "num_heads": NH,
        "inv_norm_factor": 1.0 / (D ** 0.5),
        "beta": 1.0,
    }
    params = prepare_params(params)   # one-time weight transpose/cast

    hidden_states = jax.random.normal(k5, (B, S, hidden), jnp.float32)
    residual = jax.random.normal(k6, (B, S, hidden), jnp.float32)

    # Bloom-style ALiBi tensor: [B * NH, 1, S]
    slopes = 2.0 ** (-8.0 * (jnp.arange(1, NH + 1, dtype=jnp.float32) / NH))
    pos = jnp.arange(S, dtype=jnp.float32)
    alibi = slopes[:, None, None] * pos[None, None, :]             # [NH, 1, S]
    alibi = jnp.tile(alibi[None], (B, 1, 1, 1)).reshape(B * NH, 1, S)

    output_tensor, present = flash_attention_wrapper_with_alibi_forward(
        params, hidden_states, residual, alibi)
    jax.block_until_ready(output_tensor)
    assert output_tensor.shape == (B, S, hidden)
    assert bool(jnp.all(jnp.isfinite(output_tensor)))
    print("KERNEL_OK")
</pallas_src>

<mosaic_0001>
module attributes {stable_mosaic.version = 11 : i64} {
  func.func @_matmul_bias_kernel(%arg0: i32, %arg1: i32, %arg2: i32, %arg3: memref<32x256xbf16, #tpu.memory_space<vmem>>, %arg4: memref<256x768xbf16, #tpu.memory_space<vmem>>, %arg5: memref<1x768xf32, #tpu.memory_space<vmem>>, %arg6: memref<32x768xbf16, #tpu.memory_space<vmem>>, %arg7: memref<32x768xf32, #tpu.memory_space<vmem>>) attributes {dimension_semantics = [#tpu.dimension_semantics<parallel>, #tpu.dimension_semantics<parallel>, #tpu.dimension_semantics<arbitrary>], iteration_bounds = array<i64: 1, 1, 1>, scalar_prefetch = 0 : i64, scratch_operands = 1 : i64, tpu.core_type = #tpu.core_type<tc>, window_params = [{transform_indices = @transform_0, window_bounds = array<i64: 32, 256>}, {transform_indices = @transform_1, window_bounds = array<i64: 256, 768>}, {transform_indices = @transform_2, window_bounds = array<i64: 1, 768>}, {transform_indices = @transform_3, window_bounds = array<i64: 32, 768>}]} {
    %c0_i32 = arith.constant 0 : i32
    %0 = arith.cmpi eq, %arg2, %c0_i32 : i32
    %1 = arith.extui %0 : i1 to i32
    %c0_i32_0 = arith.constant 0 : i32
    %2 = arith.cmpi ne, %1, %c0_i32_0 : i32
    scf.if %2 {
      %cst_10 = arith.constant 0.000000e+00 : f32
      %12 = vector.broadcast %cst_10 : f32 to vector<32x768xf32>
      %c0_11 = arith.constant 0 : index
      %c0_12 = arith.constant 0 : index
      %13 = vector.load %arg7[%c0_11, %c0_12] : memref<32x768xf32, #tpu.memory_space<vmem>>, vector<32x768xf32>
      tpu.vector_store %arg7[%c0_11, %c0_12], %12 {strides = array<i32>} : memref<32x768xf32, #tpu.memory_space<vmem>>, vector<32x768xf32>,
    } else {
    }
    %c0 = arith.constant 0 : index
    %c0_1 = arith.constant 0 : index
    %3 = vector.load %arg7[%c0, %c0_1] : memref<32x768xf32, #tpu.memory_space<vmem>>, vector<32x768xf32>
    %c0_2 = arith.constant 0 : index
    %c0_3 = arith.constant 0 : index
    %4 = vector.load %arg3[%c0_2, %c0_3] : memref<32x256xbf16, #tpu.memory_space<vmem>>, vector<32x256xbf16>
    %c0_4 = arith.constant 0 : index
    %c0_5 = arith.constant 0 : index
    %5 = vector.load %arg4[%c0_4, %c0_5] : memref<256x768xbf16, #tpu.memory_space<vmem>>, vector<256x768xbf16>
    %cst = arith.constant dense<0.000000e+00> : vector<32x768xf32>
    %6 = tpu.matmul %4, %5, %cst {dimension_numbers = #tpu.dot_dimension_numbers<[1], [0], [0], [1], [0, 0, 1, 1], [], []>} : vector<32x256xbf16>, vector<256x768xbf16>, vector<32x768xf32> -> vector<32x768xf32>
    %7 = arith.addf %3, %6 : vector<32x768xf32>
    %c0_6 = arith.constant 0 : index
    %c0_7 = arith.constant 0 : index
    %8 = vector.load %arg7[%c0_6, %c0_7] : memref<32x768xf32, #tpu.memory_space<vmem>>, vector<32x768xf32>
    tpu.vector_store %arg7[%c0_6, %c0_7], %7 {strides = array<i32>} : memref<32x768xf32, #tpu.memory_space<vmem>>, vector<32x768xf32>,
    %c0_i32_8 = arith.constant 0 : i32
    %9 = arith.cmpi eq, %arg2, %c0_i32_8 : i32
    %10 = arith.extui %9 : i1 to i32
    %c0_i32_9 = arith.constant 0 : i32
    %11 = arith.cmpi ne, %10, %c0_i32_9 : i32
    scf.if %11 {
      %c0_10 = arith.constant 0 : index
      %c0_11 = arith.constant 0 : index
      %12 = vector.load %arg7[%c0_10, %c0_11] : memref<32x768xf32, #tpu.memory_space<vmem>>, vector<32x768xf32>
      %c0_12 = arith.constant 0 : index
      %c0_13 = arith.constant 0 : index
      %13 = vector.load %arg5[%c0_12, %c0_13] : memref<1x768xf32, #tpu.memory_space<vmem>>, vector<1x768xf32>
      %14 = vector.broadcast %13 : vector<1x768xf32> to vector<32x768xf32>
      %15 = arith.addf %12, %14 : vector<32x768xf32>
      %16 = arith.truncf %15 : vector<32x768xf32> to vector<32x768xbf16>
      %c0_14 = arith.constant 0 : index
      %c0_15 = arith.constant 0 : index
      %17 = vector.load %arg6[%c0_14, %c0_15] : memref<32x768xbf16, #tpu.memory_space<vmem>>, vector<32x768xbf16>
      tpu.vector_store %arg6[%c0_14, %c0_15], %16 {strides = array<i32>} : memref<32x768xbf16, #tpu.memory_space<vmem>>, vector<32x768xbf16>,
    } else {
    }
    return
  }
  func.func @transform_0(%arg0: i32, %arg1: i32, %arg2: i32) -> (i32, i32) {
    %c0_i32 = arith.constant 0 : i32
    return %arg0, %arg2 : i32, i32
  }
  func.func @transform_1(%arg0: i32, %arg1: i32, %arg2: i32) -> (i32, i32) {
    %c0_i32 = arith.constant 0 : i32
    return %arg2, %arg1 : i32, i32
  }
  func.func @transform_2(%arg0: i32, %arg1: i32, %arg2: i32) -> (i32, i32) {
    %c0_i32 = arith.constant 0 : i32
    %c0_i32_0 = arith.constant 0 : i32
    return %c0_i32, %arg1 : i32, i32
  }
  func.func @transform_3(%arg0: i32, %arg1: i32, %arg2: i32) -> (i32, i32) {
    %c0_i32 = arith.constant 0 : i32
    return %arg0, %arg1 : i32, i32
  }
}

</mosaic_0001>

<llo_original>
// kernel: tpu_custom_call.1
$region0: #{tpu_custom_call.1}
  #allocation0 [shape = 'u32[]', space=smem, size = 0x4, offset = 0x4, fixed_abs, tag = 'smem constant byte address 0x4 - core index']
  #allocation1 [shape = 'u32[144,128]{1,0:T(1,128)}', space=vmem, size = 0x12000, scoped, tag = 'internal scratch']
  #allocation2 [shape = 'f32[32,768]{1,0:T(8,128)}', space=vmem, size = 0x18000, scoped, tag = 'scratch operand']
  %s0 = inlined_call_operand.hbm [shape: bf16[32,256], index: 0, kind: input, shape index: {}]
  %s1 = inlined_call_operand.hbm [shape: bf16[256,768], index: 1, kind: input, shape index: {}]
  %s2 = inlined_call_operand.vmem [shape: f32[1,768], index: 2, kind: input, shape index: {}]
  %s3 = inlined_call_operand.hbm [shape: bf16[32,768], index: 3, kind: output, shape index: {}]
  %s4 = sld [smem:[#allocation0]]
  $region38: #{tpu_custom_call.1} parent=0
    _
  %s6 = ssub.s32 1, %s4
  %s7 = scalar_select 0, %s6, %s4
  $region1: #{tpu_custom_call.1} parent=0
    #allocation3 [shape = 'u8[16384]{0}', space=vmem, size = 0x4000, scoped, tag = 'input window, operand 0, single buffered']
    #allocation4 [shape = 's32[1]{0}', space=sflag, size = 0x4, scoped, tag = 'scoped memory for tpu_custom_call.1']
    #allocation5 [shape = 's32[1]{0}', space=sflag, size = 0x4, scoped, tag = 'scoped memory for tpu_custom_call.1']
    #allocation6 [shape = 'u8[393216]{0}', space=vmem, size = 0x60000, scoped, tag = 'input window, operand 1, single buffered']
    #allocation7 [shape = 's32[1]{0}', space=sflag, size = 0x4, scoped, tag = 'scoped memory for tpu_custom_call.1']
    #allocation8 [shape = 'u8[49152]{0}', space=vmem, size = 0xc000, scoped, tag = 'output window, operand 0, single buffered']
    %8 = vsyncpa [#allocation4], 0
    %9 = vsyncpa [#allocation7], 0
    %10 = vsyncpa [#allocation5], 0
    // Predicated region
    $region2: #{tpu_custom_call.1} parent=1 // pred_check
      _
    $region3: #{tpu_custom_call.1} parent=1 // pred_check_branch
      %12 = sbr.rel (0) target = $region5
    $region4: #{tpu_custom_call.1} parent=1 // pred_region
      %s14 = ssub.s32 512, 512
      %15 = vsyncadd [#allocation4], %s14
      %s16 = sshll.u32 [#allocation3], 4
      %s17 = int_to_ptr.vmem [resolvable:$true] %s16
      %22 = dma.hbm_to_vmem [thread:$0]  %s0, 512, %s17, [#allocation4], 128, 128, 8
    $region5: #{tpu_custom_call.1} parent=1 // pred_fallthru
      _
    // Predicated region
    $region6: #{tpu_custom_call.1} parent=1 // pred_check
      _
    $region7: #{tpu_custom_call.1} parent=1 // pred_check_branch
      %24 = sbr.rel (0) target = $region9
    $region8: #{tpu_custom_call.1} parent=1 // pred_region
      %s26 = ssub.s32 12288, 12288
      %27 = vsyncadd [#allocation7], %s26
      %s28 = sshll.u32 [#allocation6], 4
      %s29 = int_to_ptr.vmem [resolvable:$true] %s28
      %34 = dma.hbm_to_vmem [thread:$0]  %s1, 12288, %s29, [#allocation7], 384, 384, 24
    $region9: #{tpu_custom_call.1} parent=1 // pred_fallthru
      _
    // Predicated region
    $region10: #{tpu_custom_call.1} parent=1 // pred_check
      _
    $region11: #{tpu_custom_call.1} parent=1 // pred_check_branch
      %36 = sbr.rel (0) target = $region13
    $region12: #{tpu_custom_call.1} parent=1 // pred_region
      _
    $region13: #{tpu_custom_call.1} parent=1 // pred_fallthru
      _
    // Predicated region
    $region14: #{tpu_custom_call.1} parent=1 // pred_check
      _
    $region15: #{tpu_custom_call.1} parent=1 // pred_check_branch
      %38 = sbr.rel (0) target = $region17
    $region16: #{tpu_custom_call.1} parent=1 // pred_region
      %39 = dma.done [#allocation4], 512
    $region17: #{tpu_custom_call.1} parent=1 // pred_fallthru
      _
    // Predicated region
    $region18: #{tpu_custom_call.1} parent=1 // pred_check
      _
    $region19: #{tpu_custom_call.1} parent=1 // pred_check_branch
      %41 = sbr.rel (0) target = $region21
    $region20: #{tpu_custom_call.1} parent=1 // pred_region
      %42 = dma.done [#allocation7], 12288
    $region21: #{tpu_custom_call.1} parent=1 // pred_fallthru
      _
    %p43 = scmp.eq.s32.totalorder 0, 0
    // Predicated region
    $region22: #{tpu_custom_call.1} parent=1 // pred_check
      %p44 = pneg %p43
    $region23: #{tpu_custom_call.1} parent=1 // pred_check_branch
      %46 = sbr.rel (%p44) target = $region25
    $region24: #{tpu_custom_call.1} parent=1 // pred_region
      %47 = vst [vmem:[#allocation2] sm:$0xff] 0.0
      %48 = vst [vmem:[#allocation2 + $0x8] sm:$0xff] 0.0
      %49 = vst [vmem:[#allocation2 + $0x10] sm:$0xff] 0.0
      %50 = vst [vmem:[#allocation2 + $0x18] sm:$0xff] 0.0
      %51 = vst [vmem:[#allocation2 + $0x20] sm:$0xff] 0.0
      %52 = vst [vmem:[#allocation2 + $0x28] sm:$0xff] 0.0
      %53 = vst [vmem:[#allocation2 + $0x30] sm:$0xff] 0.0
      %54 = vst [vmem:[#allocation2 + $0x38] sm:$0xff] 0.0
      %55 = vst [vmem:[#allocation2 + $0x40] sm:$0xff] 0.0
      %56 = vst [vmem:[#allocation2 + $0x48] sm:$0xff] 0.0
      %57 = vst [vmem:[#allocation2 + $0x50] sm:$0xff] 0.0
      %58 = vst [vmem:[#allocation2 + $0x58] sm:$0xff] 0.0
      %59 = vst [vmem:[#allocation2 + $0x60] sm:$0xff] 0.0
      %60 = vst [vmem:[#allocation2 + $0x68] sm:$0xff] 0.0
      %61 = vst [vmem:[#allocation2 + $0x70] sm:$0xff] 0.0
      %62 = vst [vmem:[#allocation2 + $0x78] sm:$0xff] 0.0
      %63 = vst [vmem:[#allocation2 + $0x80] sm:$0xff] 0.0
      %64 = vst [vmem:[#allocation2 + $0x88] sm:$0xff] 0.0
      %65 = vst [vmem:[#allocation2 + $0x90] sm:$0xff] 0.0
      %66 = vst [vmem:[#allocation2 + $0x98] sm:$0xff] 0.0
      %67 = vst [vmem:[#allocation2 + $0xa0] sm:$0xff] 0.0
      %68 = vst [vmem:[#allocation2 + $0xa8] sm:$0xff] 0.0
      %69 = vst [vmem:[#allocation2 + $0xb0] sm:$0xff] 0.0
      %70 = vst [vmem:[#allocation2 + $0xb8] sm:$0xff] 0.0
    $region25: #{tpu_custom_call.1} parent=1 // pred_fallthru
      _
    %v71 = vld [vmem:[#allocation2] sm:$0xff]
    %v72 = vld [vmem:[#allocation2 + $0x8] sm:$0xff]
    %v73 = vld [vmem:[#allocation2 + $0x10] sm:$0xff]
    %v74 = vld [vmem:[#allocation2 + $0x18] sm:$0xff]
    %v75 = vld [vmem:[#allocation2 + $0x20] sm:$0xff]
    %v76 = vld [vmem:[#allocation2 + $0x28] sm:$0xff]
    %v77 = vld [vmem:[#allocation2 + $0x30] sm:$0xff]
    %v78 = vld [vmem:[#allocation2 + $0x38] sm:$0xff]
    %v79 = vld [vmem:[#allocation2 + $0x40] sm:$0xff]
    %v80 = vld [vmem:[#allocation2 + $0x48] sm:$0xff]
    %v81 = vld [vmem:[#allocation2 + $0x50] sm:$0xff]
    %v82 = vld [vmem:[#allocation2 + $0x58] sm:$0xff]
    %v83 = vld [vmem:[#allocation2 + $0x60] sm:$0xff]
    %v84 = vld [vmem:[#allocation2 + $0x68] sm:$0xff]
    %v85 = vld [vmem:[#allocation2 + $0x70] sm:$0xff]
    %v86 = vld [vmem:[#allocation2 + $0x78] sm:$0xff]
    %v87 = vld [vmem:[#allocation2 + $0x80] sm:$0xff]
    %v88 = vld [vmem:[#allocation2 + $0x88] sm:$0xff]
    %v89 = vld [vmem:[#allocation2 + $0x90] sm:$0xff]
    %v90 = vld [vmem:[#allocation2 + $0x98] sm:$0xff]
    %v91 = vld [vmem:[#allocation2 + $0xa0] sm:$0xff]
    %v92 = vld [vmem:[#allocation2 + $0xa8] sm:$0xff]
    %v93 = vld [vmem:[#allocation2 + $0xb0] sm:$0xff]
    %v94 = vld [vmem:[#allocation2 + $0xb8] sm:$0xff]
    %v95 = vld [vmem:[#allocation3] sm:$0xff]
    %v96 = vld [vmem:[#allocation3 + $0x8] sm:$0xff]
    %v97 = vld [vmem:[#allocation3 + $0x10] sm:$0xff]
    %v98 = vld [vmem:[#allocation3 + $0x18] sm:$0xff]
    %v99 = vld [vmem:[#allocation6] sm:$0xff]
    %v100 = vld [vmem:[#allocation6 + $0x8] sm:$0xff]
    %v101 = vld [vmem:[#allocation6 + $0x10] sm:$0xff]
    %v102 = vld [vmem:[#allocation6 + $0x18] sm:$0xff]
    %v103 = vld [vmem:[#allocation6 + $0x20] sm:$0xff]
    %v104 = vld [vmem:[#allocation6 + $0x28] sm:$0xff]
    %v105 = vld [vmem:[#allocation6 + $0x30] sm:$0xff]
    %v106 = vld [vmem:[#allocation6 + $0x38] sm:$0xff]
    %v107 = vld [vmem:[#allocation6 + $0x40] sm:$0xff]
    %v108 = vld [vmem:[#allocation6 + $0x48] sm:$0xff]
    %v109 = vld [vmem:[#allocation6 + $0x50] sm:$0xff]
    %v110 = vld [vmem:[#allocation6 + $0x58] sm:$0xff]
    %v111 = vld [vmem:[#allocation6 + $0x60] sm:$0xff]
    %v112 = vld [vmem:[#allocation6 + $0x68] sm:$0xff]
    %v113 = vld [vmem:[#allocation6 + $0x70] sm:$0xff]
    %v114 = vld [vmem:[#allocation6 + $0x78] sm:$0xff]
    %v115 = vld [vmem:[#allocation6 + $0x80] sm:$0xff]
    %v116 = vld [vmem:[#allocation6 + $0x88] sm:$0xff]
    %v117 = vld [vmem:[#allocation6 + $0x90] sm:$0xff]
    %v118 = vld [vmem:[#allocation6 + $0x98] sm:$0xff]
    %v119 = vld [vmem:[#allocation6 + $0xa0] sm:$0xff]
    %v120 = vld [vmem:[#allocation6 + $0xa8] sm:$0xff]
    %v121 = vld [vmem:[#allocation6 + $0xb0] sm:$0xff]
    %v122 = vld [vmem:[#allocation6 + $0xb8] sm:$0xff]
    %v123 = vld [vmem:[#allocation6 + $0xc0] sm:$0xff]
    %v124 = vld [vmem:[#allocation6 + $0xc8] sm:$0xff]
    %v125 = vld [vmem:[#allocation6 + $0xd0] sm:$0xff]
    %v126 = vld [vmem:[#allocation6 + $0xd8] sm:$0xff]
    %v127 = vld [vmem:[#allocation6 + $0xe0] sm:$0xff]
    %v128 = vld [vmem:[#allocation6 + $0xe8] sm:$0xff]
    %v129 = vld [vmem:[#allocation6 + $0xf0] sm:$0xff]
    %v130 = vld [vmem:[#allocation6 + $0xf8] sm:$0xff]
    %v131 = vld [vmem:[#allocation6 + $0x100] sm:$0xff]
    %v132 = vld [vmem:[#allocation6 + $0x108] sm:$0xff]
    %v133 = vld [vmem:[#allocation6 + $0x110] sm:$0xff]
    %v134 = vld [vmem:[#allocation6 + $0x118] sm:$0xff]
    %v135 = vld [vmem:[#allocation6 + $0x120] sm:$0xff]
    %v136 = vld [vmem:[#allocation6 + $0x128] sm:$0xff]
    %v137 = vld [vmem:[#allocation6 + $0x130] sm:$0xff]
    %v138 = vld [vmem:[#allocation6 + $0x138] sm:$0xff]
    %v139 = vld [vmem:[#allocation6 + $0x140] sm:$0xff]
    %v140 = vld [vmem:[#allocation6 + $0x148] sm:$0xff]
    %v141 = vld [vmem:[#allocation6 + $0x150] sm:$0xff]
    %v142 = vld [vmem:[#allocation6 + $0x158] sm:$0xff]
    %v143 = vld [vmem:[#allocation6 + $0x160] sm:$0xff]
    %v144 = vld [vmem:[#allocation6 + $0x168] sm:$0xff]
    %v145 = vld [vmem:[#allocation6 + $0x170] sm:$0xff]
    %v146 = vld [vmem:[#allocation6 + $0x178] sm:$0xff]
    %v147 = vld [vmem:[#allocation6 + $0x180] sm:$0xff]
    %v148 = vld [vmem:[#allocation6 + $0x188] sm:$0xff]
    %v149 = vld [vmem:[#allocation6 + $0x190] sm:$0xff]
    %v150 = vld [vmem:[#allocation6 + $0x198] sm:$0xff]
    %v151 = vld [vmem:[#allocation6 + $0x1a0] sm:$0xff]
    %v152 = vld [vmem:[#allocation6 + $0x1a8] sm:$0xff]
    %v153 = vld [vmem:[#allocation6 + $0x1b0] sm:$0xff]
    %v154 = vld [vmem:[#allocation6 + $0x1b8] sm:$0xff]
    %v155 = vld [vmem:[#allocation6 + $0x1c0] sm:$0xff]
    %v156 = vld [vmem:[#allocation6 + $0x1c8] sm:$0xff]
    %v157 = vld [vmem:[#allocation6 + $0x1d0] sm:$0xff]
    %v158 = vld [vmem:[#allocation6 + $0x1d8] sm:$0xff]
    %v159 = vld [vmem:[#allocation6 + $0x1e0] sm:$0xff]
    %v160 = vld [vmem:[#allocation6 + $0x1e8] sm:$0xff]
    %v161 = vld [vmem:[#allocation6 + $0x1f0] sm:$0xff]
    %v162 = vld [vmem:[#allocation6 + $0x1f8] sm:$0xff]
    %v163 = vld [vmem:[#allocation6 + $0x200] sm:$0xff]
    %v164 = vld [vmem:[#allocation6 + $0x208] sm:$0xff]
    %v165 = vld [vmem:[#allocation6 + $0x210] sm:$0xff]
    %v166 = vld [vmem:[#allocation6 + $0x218] sm:$0xff]
    %v167 = vld [vmem:[#allocation6 + $0x220] sm:$0xff]
    %v168 = vld [vmem:[#allocation6 + $0x228] sm:$0xff]
    %v169 = vld [vmem:[#allocation6 + $0x230] sm:$0xff]
    %v170 = vld [vmem:[#allocation6 + $0x238] sm:$0xff]
    %v171 = vld [vmem:[#allocation6 + $0x240] sm:$0xff]
    %v172 = vld [vmem:[#allocation6 + $0x248] sm:$0xff]
    %v173 = vld [vmem:[#allocation6 + $0x250] sm:$0xff]
    %v174 = vld [vmem:[#allocation6 + $0x258] sm:$0xff]
    %v175 = vld [vmem:[#allocation6 + $0x260] sm:$0xff]
    %v176 = vld [vmem:[#allocation6 + $0x268] sm:$0xff]
    %v177 = vld [vmem:[#allocation6 + $0x270] sm:$0xff]
    %v178 = vld [vmem:[#allocation6 + $0x278] sm:$0xff]
    %v179 = vld [vmem:[#allocation6 + $0x280] sm:$0xff]
    %v180 = vld [vmem:[#allocation6 + $0x288] sm:$0xff]
    %v181 = vld [vmem:[#allocation6 + $0x290] sm:$0xff]
    %v182 = vld [vmem:[#allocation6 + $0x298] sm:$0xff]
    %v183 = vld [vmem:[#allocation6 + $0x2a0] sm:$0xff]
    %v184 = vld [vmem:[#allocation6 + $0x2a8] sm:$0xff]
    %v185 = vld [vmem:[#allocation6 + $0x2b0] sm:$0xff]
    %v186 = vld [vmem:[#allocation6 + $0x2b8] sm:$0xff]
    %v187 = vld [vmem:[#allocation6 + $0x2c0] sm:$0xff]
    %v188 = vld [vmem:[#allocation6 + $0x2c8] sm:$0xff]
    %v189 = vld [vmem:[#allocation6 + $0x2d0] sm:$0xff]
    %v190 = vld [vmem:[#allocation6 + $0x2d8] sm:$0xff]
    %v191 = vld [vmem:[#allocation6 + $0x2e0] sm:$0xff]
    %v192 = vld [vmem:[#allocation6 + $0x2e8] sm:$0xff]
    %v193 = vld [vmem:[#allocation6 + $0x2f0] sm:$0xff]
    %v194 = vld [vmem:[#allocation6 + $0x2f8] sm:$0xff]
    %v199 = vunpack.c.l.b16 %v95
    %v200 = vunpack.c.h.b16 %v95
    %v201 = vunpack.c.l.b16 %v96
    %v202 = vunpack.c.h.b16 %v96
    %v203 = vunpack.c.l.b16 %v97
    %v204 = vunpack.c.h.b16 %v97
    %v205 = vunpack.c.l.b16 %v98
    %v206 = vunpack.c.h.b16 %v98
    %v207 = vpack.c.b16 %v201, %v199
    %v208 = vpack.c.b16 %v202, %v200
    %v209 = vpack.c.b16 %v205, %v203
    %v210 = vpack.c.b16 %v206, %v204
    %v311 = vunpack.c.l.b16 %v99
    %v312 = vunpack.c.h.b16 %v99
    %v313 = vunpack.c.l.b16 %v100
    %v314 = vunpack.c.h.b16 %v100
    %v315 = vunpack.c.l.b16 %v101
    %v316 = vunpack.c.h.b16 %v101
    %v317 = vunpack.c.l.b16 %v102
    %v318 = vunpack.c.h.b16 %v102
    %v319 = vunpack.c.l.b16 %v103
    %v320 = vunpack.c.h.b16 %v103
    %v321 = vunpack.c.l.b16 %v104
    %v322 = vunpack.c.h.b16 %v104
    %v323 = vunpack.c.l.b16 %v105
    %v324 = vunpack.c.h.b16 %v105
    %v325 = vunpack.c.l.b16 %v106
    %v326 = vunpack.c.h.b16 %v106
    %v327 = vunpack.c.l.b16 %v107
    %v328 = vunpack.c.h.b16 %v107
    %v329 = vunpack.c.l.b16 %v108
    %v330 = vunpack.c.h.b16 %v108
    %v331 = vunpack.c.l.b16 %v109
    %v332 = vunpack.c.h.b16 %v109
    %v333 = vunpack.c.l.b16 %v110
    %v334 = vunpack.c.h.b16 %v110
    %v335 = vunpack.c.l.b16 %v111
    %v336 = vunpack.c.h.b16 %v111
    %v337 = vunpack.c.l.b16 %v112
    %v338 = vunpack.c.h.b16 %v112
    %v339 = vunpack.c.l.b16 %v113
    %v340 = vunpack.c.h.b16 %v113
    %v341 = vunpack.c.l.b16 %v114
    %v342 = vunpack.c.h.b16 %v114
    %v343 = vunpack.c.l.b16 %v115
    %v344 = vunpack.c.h.b16 %v115
    %v345 = vunpack.c.l.b16 %v116
    %v346 = vunpack.c.h.b16 %v116
    %v347 = vunpack.c.l.b16 %v117
    %v348 = vunpack.c.h.b16 %v117
    %v349 = vunpack.c.l.b16 %v118
    %v350 = vunpack.c.h.b16 %v118
    %v351 = vunpack.c.l.b16 %v119
    %v352 = vunpack.c.h.b16 %v119
    %v353 = vunpack.c.l.b16 %v120
    %v354 = vunpack.c.h.b16 %v120
    %v355 = vunpack.c.l.b16 %v121
    %v356 = vunpack.c.h.b16 %v121
    %v357 = vunpack.c.l.b16 %v122
    %v358 = vunpack.c.h.b16 %v122
    %v359 = vunpack.c.l.b16 %v123
    %v360 = vunpack.c.h.b16 %v123
    %v361 = vunpack.c.l.b16 %v124
    %v362 = vunpack.c.h.b16 %v124
    %v363 = vunpack.c.l.b16 %v125
    %v364 = vunpack.c.h.b16 %v125
    %v365 = vunpack.c.l.b16 %v126
    %v366 = vunpack.c.h.b16 %v126
    %v367 = vunpack.c.l.b16 %v127
    %v368 = vunpack.c.h.b16 %v127
    %v369 = vunpack.c.l.b16 %v128
    %v370 = vunpack.c.h.b16 %v128
    %v371 = vunpack.c.l.b16 %v129
    %v372 = vunpack.c.h.b16 %v129
    %v373 = vunpack.c.l.b16 %v130
    %v374 = vunpack.c.h.b16 %v130
    %v375 = vunpack.c.l.b16 %v131
    %v376 = vunpack.c.h.b16 %v131
    %v377 = vunpack.c.l.b16 %v132
    %v378 = vunpack.c.h.b16 %v132
    %v379 = vunpack.c.l.b16 %v133
    %v380 = vunpack.c.h.b16 %v133
    %v381 = vunpack.c.l.b16 %v134
    %v382 = vunpack.c.h.b16 %v134
    %v383 = vunpack.c.l.b16 %v135
    %v384 = vunpack.c.h.b16 %v135
    %v385 = vunpack.c.l.b16 %v136
    %v386 = vunpack.c.h.b16 %v136
    %v387 = vunpack.c.l.b16 %v137
    %v388 = vunpack.c.h.b16 %v137
    %v389 = vunpack.c.l.b16 %v138
    %v390 = vunpack.c.h.b16 %v138
    %v391 = vunpack.c.l.b16 %v139
    %v392 = vunpack.c.h.b16 %v139
    %v393 = vunpack.c.l.b16 %v140
    %v394 = vunpack.c.h.b16 %v140
    %v395 = vunpack.c.l.b16 %v141
    %v396 = vunpack.c.h.b16 %v141
    %v397 = vunpack.c.l.b16 %v142
    %v398 = vunpack.c.h.b16 %v142
    %v399 = vunpack.c.l.b16 %v143
    %v400 = vunpack.c.h.b16 %v143
    %v401 = vunpack.c.l.b16 %v144
    %v402 = vunpack.c.h.b16 %v144
    %v403 = vunpack.c.l.b16 %v145
    %v404 = vunpack.c.h.b16 %v145
    %v405 = vunpack.c.l.b16 %v146
    %v406 = vunpack.c.h.b16 %v146
    %v407 = vunpack.c.l.b16 %v147
    %v408 = vunpack.c.h.b16 %v147
    %v409 = vunpack.c.l.b16 %v148
    %v410 = vunpack.c.h.b16 %v148
    %v411 = vunpack.c.l.b16 %v149
    %v412 = vunpack.c.h.b16 %v149
    %v413 = vunpack.c.l.b16 %v150
    %v414 = vunpack.c.h.b16 %v150
    %v415 = vunpack.c.l.b16 %v151
    %v416 = vunpack.c.h.b16 %v151
    %v417 = vunpack.c.l.b16 %v152
    %v418 = vunpack.c.h.b16 %v152
    %v419 = vunpack.c.l.b16 %v153
    %v420 = vunpack.c.h.b16 %v153
    %v421 = vunpack.c.l.b16 %v154
    %v422 = vunpack.c.h.b16 %v154
    %v423 = vunpack.c.l.b16 %v155
    %v424 = vunpack.c.h.b16 %v155
    %v425 = vunpack.c.l.b16 %v156
    %v426 = vunpack.c.h.b16 %v156
    %v427 = vunpack.c.l.b16 %v157
    %v428 = vunpack.c.h.b16 %v157
    %v429 = vunpack.c.l.b16 %v158
    %v430 = vunpack.c.h.b16 %v158
    %v431 = vunpack.c.l.b16 %v159
    %v432 = vunpack.c.h.b16 %v159
    %v433 = vunpack.c.l.b16 %v160
    %v434 = vunpack.c.h.b16 %v160
    %v435 = vunpack.c.l.b16 %v161
    %v436 = vunpack.c.h.b16 %v161
    %v437 = vunpack.c.l.b16 %v162
    %v438 = vunpack.c.h.b16 %v162
    %v439 = vunpack.c.l.b16 %v163
    %v440 = vunpack.c.h.b16 %v163
    %v441 = vunpack.c.l.b16 %v164
    %v442 = vunpack.c.h.b16 %v164
    %v443 = vunpack.c.l.b16 %v165
    %v444 = vunpack.c.h.b16 %v165
    %v445 = vunpack.c.l.b16 %v166
    %v446 = vunpack.c.h.b16 %v166
    %v447 = vunpack.c.l.b16 %v167
    %v448 = vunpack.c.h.b16 %v167
    %v449 = vunpack.c.l.b16 %v168
    %v450 = vunpack.c.h.b16 %v168
    %v451 = vunpack.c.l.b16 %v169
    %v452 = vunpack.c.h.b16 %v169
    %v453 = vunpack.c.l.b16 %v170
    %v454 = vunpack.c.h.b16 %v170
    %v455 = vunpack.c.l.b16 %v171
    %v456 = vunpack.c.h.b16 %v171
    %v457 = vunpack.c.l.b16 %v172
    %v458 = vunpack.c.h.b16 %v172
    %v459 = vunpack.c.l.b16 %v173
    %v460 = vunpack.c.h.b16 %v173
    %v461 = vunpack.c.l.b16 %v174
    %v462 = vunpack.c.h.b16 %v174
    %v463 = vunpack.c.l.b16 %v175
    %v464 = vunpack.c.h.b16 %v175
    %v465 = vunpack.c.l.b16 %v176
    %v466 = vunpack.c.h.b16 %v176
    %v467 = vunpack.c.l.b16 %v177
    %v468 = vunpack.c.h.b16 %v177
    %v469 = vunpack.c.l.b16 %v178
    %v470 = vunpack.c.h.b16 %v178
    %v471 = vunpack.c.l.b16 %v179
    %v472 = vunpack.c.h.b16 %v179
    %v473 = vunpack.c.l.b16 %v180
    %v474 = vunpack.c.h.b16 %v180
    %v475 = vunpack.c.l.b16 %v181
    %v476 = vunpack.c.h.b16 %v181
    %v477 = vunpack.c.l.b16 %v182
    %v478 = vunpack.c.h.b16 %v182
    %v479 = vunpack.c.l.b16 %v183
    %v480 = vunpack.c.h.b16 %v183
    %v481 = vunpack.c.l.b16 %v184
    %v482 = vunpack.c.h.b16 %v184
    %v483 = vunpack.c.l.b16 %v185
    %v484 = vunpack.c.h.b16 %v185
    %v485 = vunpack.c.l.b16 %v186
    %v486 = vunpack.c.h.b16 %v186
    %v487 = vunpack.c.l.b16 %v187
    %v488 = vunpack.c.h.b16 %v187
    %v489 = vunpack.c.l.b16 %v188
    %v490 = vunpack.c.h.b16 %v188
    %v491 = vunpack.c.l.b16 %v189
    %v492 = vunpack.c.h.b16 %v189
    %v493 = vunpack.c.l.b16 %v190
    %v494 = vunpack.c.h.b16 %v190
    %v495 = vunpack.c.l.b16 %v191
    %v496 = vunpack.c.h.b16 %v191
    %v497 = vunpack.c.l.b16 %v192
    %v498 = vunpack.c.h.b16 %v192
    %v499 = vunpack.c.l.b16 %v193
    %v500 = vunpack.c.h.b16 %v193
    %v501 = vunpack.c.l.b16 %v194
    %v502 = vunpack.c.h.b16 %v194
    %v503 = vpack.c.b16 %v317, %v311
    %v504 = vpack.c.b16 %v318, %v312
    %v505 = vpack.c.b16 %v319, %v313
    %v506 = vpack.c.b16 %v320, %v314
    %v507 = vpack.c.b16 %v321, %v315
    %v508 = vpack.c.b16 %v322, %v316
    %v509 = vpack.c.b16 %v329, %v323
    %v510 = vpack.c.b16 %v330, %v324
    %v511 = vpack.c.b16 %v331, %v325
    %v512 = vpack.c.b16 %v332, %v326
    %v513 = vpack.c.b16 %v333, %v327
    %v514 = vpack.c.b16 %v334, %v328
    %v515 = vpack.c.b16 %v341, %v335
    %v516 = vpack.c.b16 %v342, %v336
    %v517 = vpack.c.b16 %v343, %v337
    %v518 = vpack.c.b16 %v344, %v338
    %v519 = vpack.c.b16 %v345, %v339
    %v520 = vpack.c.b16 %v346, %v340
    %v521 = vpack.c.b16 %v353, %v347
    %v522 = vpack.c.b16 %v354, %v348
    %v523 = vpack.c.b16 %v355, %v349
    %v524 = vpack.c.b16 %v356, %v350
    %v525 = vpack.c.b16 %v357, %v351
    %v526 = vpack.c.b16 %v358, %v352
    %v527 = vpack.c.b16 %v365, %v359
    %v528 = vpack.c.b16 %v366, %v360
    %v529 = vpack.c.b16 %v367, %v361
    %v530 = vpack.c.b16 %v368, %v362
    %v531 = vpack.c.b16 %v369, %v363
    %v532 = vpack.c.b16 %v370, %v364
    %v533 = vpack.c.b16 %v377, %v371
    %v534 = vpack.c.b16 %v378, %v372
    %v535 = vpack.c.b16 %v379, %v373
    %v536 = vpack.c.b16 %v380, %v374
    %v537 = vpack.c.b16 %v381, %v375
    %v538 = vpack.c.b16 %v382, %v376
    %v539 = vpack.c.b16 %v389, %v383
    %v540 = vpack.c.b16 %v390, %v384
    %v541 = vpack.c.b16 %v391, %v385
    %v542 = vpack.c.b16 %v392, %v386
    %v543 = vpack.c.b16 %v393, %v387
    %v544 = vpack.c.b16 %v394, %v388
    %v545 = vpack.c.b16 %v401, %v395
    %v546 = vpack.c.b16 %v402, %v396
    %v547 = vpack.c.b16 %v403, %v397
    %v548 = vpack.c.b16 %v404, %v398
    %v549 = vpack.c.b16 %v405, %v399
    %v550 = vpack.c.b16 %v406, %v400
    %v551 = vpack.c.b16 %v413, %v407
    %v552 = vpack.c.b16 %v414, %v408
    %v553 = vpack.c.b16 %v415, %v409
    %v554 = vpack.c.b16 %v416, %v410
    %v555 = vpack.c.b16 %v417, %v411
    %v556 = vpack.c.b16 %v418, %v412
    %v557 = vpack.c.b16 %v425, %v419
    %v558 = vpack.c.b16 %v426, %v420
    %v559 = vpack.c.b16 %v427, %v421
    %v560 = vpack.c.b16 %v428, %v422
    %v561 = vpack.c.b16 %v429, %v423
    %v562 = vpack.c.b16 %v430, %v424
    %v563 = vpack.c.b16 %v437, %v431
    %v564 = vpack.c.b16 %v438, %v432
    %v565 = vpack.c.b16 %v439, %v433
    %v566 = vpack.c.b16 %v440, %v434
    %v567 = vpack.c.b16 %v441, %v435
    %v568 = vpack.c.b16 %v442, %v436
    %v569 = vpack.c.b16 %v449, %v443
    %v570 = vpack.c.b16 %v450, %v444
    %v571 = vpack.c.b16 %v451, %v445
    %v572 = vpack.c.b16 %v452, %v446
    %v573 = vpack.c.b16 %v453, %v447
    %v574 = vpack.c.b16 %v454, %v448
    %v575 = vpack.c.b16 %v461, %v455
    %v576 = vpack.c.b16 %v462, %v456
    %v577 = vpack.c.b16 %v463, %v457
    %v578 = vpack.c.b16 %v464, %v458
    %v579 = vpack.c.b16 %v465, %v459
    %v580 = vpack.c.b16 %v466, %v460
    %v581 = vpack.c.b16 %v473, %v467
    %v582 = vpack.c.b16 %v474, %v468
    %v583 = vpack.c.b16 %v475, %v469
    %v584 = vpack.c.b16 %v476, %v470
    %v585 = vpack.c.b16 %v477, %v471
    %v586 = vpack.c.b16 %v478, %v472
    %v587 = vpack.c.b16 %v485, %v479
    %v588 = vpack.c.b16 %v486, %v480
    %v589 = vpack.c.b16 %v487, %v481
    %v590 = vpack.c.b16 %v488, %v482
    %v591 = vpack.c.b16 %v489, %v483
    %v592 = vpack.c.b16 %v490, %v484
    %v593 = vpack.c.b16 %v497, %v491
    %v594 = vpack.c.b16 %v498, %v492
    %v595 = vpack.c.b16 %v499, %v493
    %v596 = vpack.c.b16 %v500, %v494
    %v597 = vpack.c.b16 %v501, %v495
    %v598 = vpack.c.b16 %v502, %v496
    %695 = vmatprep.subr.bf16.mxu0 %v504
    %696 = vmatpush1.bf16.msra.mxu0 %v503
    %697 = vmatprep.subr.bf16.mxu0 %v510
    %698 = vmatpush1.bf16.msra.mxu0 %v509
    %699 = vmatprep.subr.bf16.mxu0 %v516
    %700 = vmatpush1.bf16.msra.mxu0 %v515
    %701 = vmatprep.subr.bf16.mxu0 %v522
    %702 = vmatpush1.bf16.msra.mxu0 %v521
    %703 = vmatprep.subr.bf16.mxu0 %v528
    %704 = vmatpush1.bf16.msra.mxu0 %v527
    %705 = vmatprep.subr.bf16.mxu0 %v534
    %706 = vmatpush1.bf16.msra.mxu0 %v533
    %707 = vmatprep.subr.bf16.mxu0 %v540
    %708 = vmatpush1.bf16.msra.mxu0 %v539
    %709 = vmatprep.subr.bf16.mxu0 %v546
    %710 = vmatpush1.bf16.msra.mxu0 %v545
    %711 = vmatprep.subr.bf16.mxu0 %v552
    %712 = vmatpush1.bf16.msra.mxu0 %v551
    %713 = vmatprep.subr.bf16.mxu0 %v558
    %714 = vmatpush1.bf16.msra.mxu0 %v557
    %715 = vmatprep.subr.bf16.mxu0 %v564
    %716 = vmatpush1.bf16.msra.mxu0 %v563
    %717 = vmatprep.subr.bf16.mxu0 %v570
    %718 = vmatpush1.bf16.msra.mxu0 %v569
    %719 = vmatprep.subr.bf16.mxu0 %v576
    %720 = vmatpush1.bf16.msra.mxu0 %v575
    %721 = vmatprep.subr.bf16.mxu0 %v582
    %722 = vmatpush1.bf16.msra.mxu0 %v581
    %723 = vmatprep.subr.bf16.mxu0 %v588
    %724 = vmatpush1.bf16.msra.mxu0 %v587
    %725 = vmatprep.subr.bf16.mxu0 %v594
    %726 = vmatpush1.bf16.msra.mxu0 %v593
    %727 = vmatprep.mubr.bf16.mxu0 %v208
    %728 = vmatmul.mubr.bf16.gmra.mrb[0].mxu0 %v207
    %v729 = vpop.f32.mrb[0].mxu0
    %v730 = vadd.f32 0.0, %v729
    %v731 = vpop.f32.mrb[0].mxu0
    %v732 = vadd.f32 0.0, %v731
    %v733 = vpop.f32.mrb[0].mxu0
    %v734 = vadd.f32 0.0, %v733
    %v735 = vpop.f32.mrb[0].mxu0
    %v736 = vadd.f32 0.0, %v735
    %737 = vmatprep.mubr.bf16.mxu0 %v210
    %738 = vmatmul.mubr.bf16.gmra.mrb[0].mxu0 %v209
    %v739 = vpop.f32.mrb[0].mxu0
    %v740 = vadd.f32 0.0, %v739
    %v741 = vpop.f32.mrb[0].mxu0
    %v742 = vadd.f32 0.0, %v741
    %v743 = vpop.f32.mrb[0].mxu0
    %v744 = vadd.f32 0.0, %v743
    %v745 = vpop.f32.mrb[0].mxu0
    %v746 = vadd.f32 0.0, %v745
    %747 = vdwg.mxu0
    %748 = vmatprep.subr.bf16.mxu0 %v506
    %749 = vmatpush1.bf16.msra.mxu0 %v505
    %750 = vmatprep.subr.bf16.mxu0 %v512
    %751 = vmatpush1.bf16.msra.mxu0 %v511
    %752 = vmatprep.subr.bf16.mxu0 %v518
    %753 = vmatpush1.bf16.msra.mxu0 %v517
    %754 = vmatprep.subr.bf16.mxu0 %v524
    %755 = vmatpush1.bf16.msra.mxu0 %v523
    %756 = vmatprep.subr.bf16.mxu0 %v530
    %757 = vmatpush1.bf16.msra.mxu0 %v529
    %758 = vmatprep.subr.bf16.mxu0 %v536
    %759 = vmatpush1.bf16.msra.mxu0 %v535
    %760 = vmatprep.subr.bf16.mxu0 %v542
    %761 = vmatpush1.bf16.msra.mxu0 %v541
    %762 = vmatprep.subr.bf16.mxu0 %v548
    %763 = vmatpush1.bf16.msra.mxu0 %v547
    %764 = vmatprep.subr.bf16.mxu0 %v554
    %765 = vmatpush1.bf16.msra.mxu0 %v553
    %766 = vmatprep.subr.bf16.mxu0 %v560
    %767 = vmatpush1.bf16.msra.mxu0 %v559
    %768 = vmatprep.subr.bf16.mxu0 %v566
    %769 = vmatpush1.bf16.msra.mxu0 %v565
    %770 = vmatprep.subr.bf16.mxu0 %v572
    %771 = vmatpush1.bf16.msra.mxu0 %v571
    %772 = vmatprep.subr.bf16.mxu0 %v578
    %773 = vmatpush1.bf16.msra.mxu0 %v577
    %774 = vmatprep.subr.bf16.mxu0 %v584
    %775 = vmatpush1.bf16.msra.mxu0 %v583
    %776 = vmatprep.subr.bf16.mxu0 %v590
    %777 = vmatpush1.bf16.msra.mxu0 %v589
    %778 = vmatprep.subr.bf16.mxu0 %v596
    %779 = vmatpush1.bf16.msra.mxu0 %v595
    %780 = vmatprep.mubr.bf16.mxu0 %v208
    %781 = vmatmul.mubr.bf16.gmra.mrb[0].mxu0 %v207
    %v782 = vpop.f32.mrb[0].mxu0
    %v783 = vadd.f32 0.0, %v782
    %v784 = vpop.f32.mrb[0].mxu0
    %v785 = vadd.f32 0.0, %v784
    %v786 = vpop.f32.mrb[0].mxu0
    %v787 = vadd.f32 0.0, %v786
    %v788 = vpop.f32.mrb[0].mxu0
    %v789 = vadd.f32 0.0, %v788
    %790 = vmatprep.mubr.bf16.mxu0 %v210
    %791 = vmatmul.mubr.bf16.gmra.mrb[0].mxu0 %v209
    %v792 = vpop.f32.mrb[0].mxu0
    %v793 = vadd.f32 0.0, %v792
    %v794 = vpop.f32.mrb[0].mxu0
    %v795 = vadd.f32 0.0, %v794
    %v796 = vpop.f32.mrb[0].mxu0
    %v797 = vadd.f32 0.0, %v796
    %v798 = vpop.f32.mrb[0].mxu0
    %v799 = vadd.f32 0.0, %v798
    %800 = vdwg.mxu0
    %801 = vmatprep.subr.bf16.mxu0 %v508
    %802 = vmatpush1.bf16.msra.mxu0 %v507
    %803 = vmatprep.subr.bf16.mxu0 %v514
    %804 = vmatpush1.bf16.msra.mxu0 %v513
    %805 = vmatprep.subr.bf16.mxu0 %v520
    %806 = vmatpush1.bf16.msra.mxu0 %v519
    %807 = vmatprep.subr.bf16.mxu0 %v526
    %808 = vmatpush1.bf16.msra.mxu0 %v525
    %809 = vmatprep.subr.bf16.mxu0 %v532
    %810 = vmatpush1.bf16.msra.mxu0 %v531
    %811 = vmatprep.subr.bf16.mxu0 %v538
    %812 = vmatpush1.bf16.msra.mxu0 %v537
    %813 = vmatprep.subr.bf16.mxu0 %v544
    %814 = vmatpush1.bf16.msra.mxu0 %v543
    %815 = vmatprep.subr.bf16.mxu0 %v550
    %816 = vmatpush1.bf16.msra.mxu0 %v549
    %817 = vmatprep.subr.bf16.mxu0 %v556
    %818 = vmatpush1.bf16.msra.mxu0 %v555
    %819 = vmatprep.subr.bf16.mxu0 %v562
    %820 = vmatpush1.bf16.msra.mxu0 %v561
    %821 = vmatprep.subr.bf16.mxu0 %v568
    %822 = vmatpush1.bf16.msra.mxu0 %v567
    %823 = vmatprep.subr.bf16.mxu0 %v574
    %824 = vmatpush1.bf16.msra.mxu0 %v573
    %825 = vmatprep.subr.bf16.mxu0 %v580
    %826 = vmatpush1.bf16.msra.mxu0 %v579
    %827 = vmatprep.subr.bf16.mxu0 %v586
    %828 = vmatpush1.bf16.msra.mxu0 %v585
    %829 = vmatprep.subr.bf16.mxu0 %v592
    %830 = vmatpush1.bf16.msra.mxu0 %v591
    %831 = vmatprep.subr.bf16.mxu0 %v598
    %832 = vmatpush1.bf16.msra.mxu0 %v597
    %833 = vmatprep.mubr.bf16.mxu0 %v208
    %834 = vmatmul.mubr.bf16.gmra.mrb[0].mxu0 %v207
    %v835 = vpop.f32.mrb[0].mxu0
    %v836 = vadd.f32 0.0, %v835
    %v837 = vpop.f32.mrb[0].mxu0
    %v838 = vadd.f32 0.0, %v837
    %v839 = vpop.f32.mrb[0].mxu0
    %v840 = vadd.f32 0.0, %v839
    %v841 = vpop.f32.mrb[0].mxu0
    %v842 = vadd.f32 0.0, %v841
    %843 = vmatprep.mubr.bf16.mxu0 %v210
    %844 = vmatmul.mubr.bf16.gmra.mrb[0].mxu0 %v209
    %v845 = vpop.f32.mrb[0].mxu0
    %v846 = vadd.f32 0.0, %v845
    %v847 = vpop.f32.mrb[0].mxu0
    %v848 = vadd.f32 0.0, %v847
    %v849 = vpop.f32.mrb[0].mxu0
    %v850 = vadd.f32 0.0, %v849
    %v851 = vpop.f32.mrb[0].mxu0
    %v852 = vadd.f32 0.0, %v851
    %853 = vdwg.mxu0
    %v854 = vadd.f32 %v71, %v730
    %v855 = vadd.f32 %v72, %v732
    %v856 = vadd.f32 %v73, %v783
    %v857 = vadd.f32 %v74, %v785
    %v858 = vadd.f32 %v75, %v836
    %v859 = vadd.f32 %v76, %v838
    %v860 = vadd.f32 %v77, %v734
    %v861 = vadd.f32 %v78, %v736
    %v862 = vadd.f32 %v79, %v787
    %v863 = vadd.f32 %v80, %v789
    %v864 = vadd.f32 %v81, %v840
    %v865 = vadd.f32 %v82, %v842
    %v866 = vadd.f32 %v83, %v740
    %v867 = vadd.f32 %v84, %v742
    %v868 = vadd.f32 %v85, %v793
    %v869 = vadd.f32 %v86, %v795
    %v870 = vadd.f32 %v87, %v846
    %v871 = vadd.f32 %v88, %v848
    %v872 = vadd.f32 %v89, %v744
    %v873 = vadd.f32 %v90, %v746
    %v874 = vadd.f32 %v91, %v797
    %v875 = vadd.f32 %v92, %v799
    %v876 = vadd.f32 %v93, %v850
    %v877 = vadd.f32 %v94, %v852
    %878 = vst [vmem:[#allocation2] sm:$0xff] %v854
    %879 = vst [vmem:[#allocation2 + $0x8] sm:$0xff] %v855
    %880 = vst [vmem:[#allocation2 + $0x10] sm:$0xff] %v856
    %881 = vst [vmem:[#allocation2 + $0x18] sm:$0xff] %v857
    %882 = vst [vmem:[#allocation2 + $0x20] sm:$0xff] %v858
    %883 = vst [vmem:[#allocation2 + $0x28] sm:$0xff] %v859
    %884 = vst [vmem:[#allocation2 + $0x30] sm:$0xff] %v860
    %885 = vst [vmem:[#allocation2 + $0x38] sm:$0xff] %v861
    %886 = vst [vmem:[#allocation2 + $0x40] sm:$0xff] %v862
    %887 = vst [vmem:[#allocation2 + $0x48] sm:$0xff] %v863
    %888 = vst [vmem:[#allocation2 + $0x50] sm:$0xff] %v864
    %889 = vst [vmem:[#allocation2 + $0x58] sm:$0xff] %v865
    %890 = vst [vmem:[#allocation2 + $0x60] sm:$0xff] %v866
    %891 = vst [vmem:[#allocation2 + $0x68] sm:$0xff] %v867
    %892 = vst [vmem:[#allocation2 + $0x70] sm:$0xff] %v868
    %893 = vst [vmem:[#allocation2 + $0x78] sm:$0xff] %v869
    %894 = vst [vmem:[#allocation2 + $0x80] sm:$0xff] %v870
    %895 = vst [vmem:[#allocation2 + $0x88] sm:$0xff] %v871
    %896 = vst [vmem:[#allocation2 + $0x90] sm:$0xff] %v872
    %897 = vst [vmem:[#allocation2 + $0x98] sm:$0xff] %v873
    %898 = vst [vmem:[#allocation2 + $0xa0] sm:$0xff] %v874
    %899 = vst [vmem:[#allocation2 + $0xa8] sm:$0xff] %v875
    %900 = vst [vmem:[#allocation2 + $0xb0] sm:$0xff] %v876
    %901 = vst [vmem:[#allocation2 + $0xb8] sm:$0xff] %v877
    // Predicated region
    $region26: #{tpu_custom_call.1} parent=1 // pred_check
      %p902 = pneg %p43
    $region27: #{tpu_custom_call.1} parent=1 // pred_check_branch
      %904 = sbr.rel (%p902) target = $region29
    $region28: #{tpu_custom_call.1} parent=1 // pred_region
      %v905 = vld [vmem:[#allocation2] sm:$0xff]
      %v906 = vld [vmem:[#allocation2 + $0x8] sm:$0xff]
      %v907 = vld [vmem:[#allocation2 + $0x10] sm:$0xff]
      %v908 = vld [vmem:[#allocation2 + $0x18] sm:$0xff]
      %v909 = vld [vmem:[#allocation2 + $0x20] sm:$0xff]
      %v910 = vld [vmem:[#allocation2 + $0x28] sm:$0xff]
      %v911 = vld [vmem:[#allocation2 + $0x30] sm:$0xff]
      %v912 = vld [vmem:[#allocation2 + $0x38] sm:$0xff]
      %v913 = vld [vmem:[#allocation2 + $0x40] sm:$0xff]
      %v914 = vld [vmem:[#allocation2 + $0x48] sm:$0xff]
      %v915 = vld [vmem:[#allocation2 + $0x50] sm:$0xff]
      %v916 = vld [vmem:[#allocation2 + $0x58] sm:$0xff]
      %v917 = vld [vmem:[#allocation2 + $0x60] sm:$0xff]
      %v918 = vld [vmem:[#allocation2 + $0x68] sm:$0xff]
      %v919 = vld [vmem:[#allocation2 + $0x70] sm:$0xff]
      %v920 = vld [vmem:[#allocation2 + $0x78] sm:$0xff]
      %v921 = vld [vmem:[#allocation2 + $0x80] sm:$0xff]
      %v922 = vld [vmem:[#allocation2 + $0x88] sm:$0xff]
      %v923 = vld [vmem:[#allocation2 + $0x90] sm:$0xff]
      %v924 = vld [vmem:[#allocation2 + $0x98] sm:$0xff]
      %v925 = vld [vmem:[#allocation2 + $0xa0] sm:$0xff]
      %v926 = vld [vmem:[#allocation2 + $0xa8] sm:$0xff]
      %v927 = vld [vmem:[#allocation2 + $0xb0] sm:$0xff]
      %v928 = vld [vmem:[#allocation2 + $0xb8] sm:$0xff]
      %v929 = vld [vmem:[%s2] sm:$0x3f]
      %v931 = vlaneseq
      %v932 = vshrl.u32 %v931, 7
      %v933 = vsub.s32 0, %v932
      %v934 = vrot.slane %v929, %v933
      %v935 = vlaneseq
      %v936 = vshrl.u32 %v935, 7
      %v937 = vsub.s32 1, %v936
      %v938 = vrot.slane %v929, %v937
      %v939 = vlaneseq
      %v940 = vshrl.u32 %v939, 7
      %v941 = vsub.s32 2, %v940
      %v942 = vrot.slane %v929, %v941
      %v943 = vlaneseq
      %v944 = vshrl.u32 %v943, 7
      %v945 = vsub.s32 3, %v944
      %v946 = vrot.slane %v929, %v945
      %v947 = vlaneseq
      %v948 = vshrl.u32 %v947, 7
      %v949 = vsub.s32 4, %v948
      %v950 = vrot.slane %v929, %v949
      %v951 = vlaneseq
      %v952 = vshrl.u32 %v951, 7
      %v953 = vsub.s32 5, %v952
      %v954 = vrot.slane %v929, %v953
      %v961 = vadd.f32 %v905, %v934
      %v962 = vadd.f32 %v906, %v938
      %v963 = vadd.f32 %v907, %v942
      %v964 = vadd.f32 %v908, %v946
      %v965 = vadd.f32 %v909, %v950
      %v966 = vadd.f32 %v910, %v954
      %v967 = vadd.f32 %v911, %v934
      %v968 = vadd.f32 %v912, %v938
      %v969 = vadd.f32 %v913, %v942
      %v970 = vadd.f32 %v914, %v946
      %v971 = vadd.f32 %v915, %v950
      %v972 = vadd.f32 %v916, %v954
      %v973 = vadd.f32 %v917, %v934
      %v974 = vadd.f32 %v918, %v938
      %v975 = vadd.f32 %v919, %v942
      %v976 = vadd.f32 %v920, %v946
      %v977 = vadd.f32 %v921, %v950
      %v978 = vadd.f32 %v922, %v954
      %v979 = vadd.f32 %v923, %v934
      %v980 = vadd.f32 %v924, %v938
      %v981 = vadd.f32 %v925, %v942
      %v982 = vadd.f32 %v926, %v946
      %v983 = vadd.f32 %v927, %v950
      %v984 = vadd.f32 %v928, %v954
      %v985 = vpack.c.bf16 %v967, %v961
      %v986 = vpack.c.bf16 %v968, %v962
      %v987 = vpack.c.bf16 %v969, %v963
      %v988 = vpack.c.bf16 %v970, %v964
      %v989 = vpack.c.bf16 %v971, %v965
      %v990 = vpack.c.bf16 %v972, %v966
      %v991 = vpack.c.bf16 %v979, %v973
      %v992 = vpack.c.bf16 %v980, %v974
      %v993 = vpack.c.bf16 %v981, %v975
      %v994 = vpack.c.bf16 %v982, %v976
      %v995 = vpack.c.bf16 %v983, %v977
      %v996 = vpack.c.bf16 %v984, %v978
      %v1009 = vunpack.c.l.b16 %v985
      %v1010 = vunpack.c.l.b16 %v986
      %v1011 = vunpack.c.l.b16 %v987
      %v1012 = vunpack.c.l.b16 %v988
      %v1013 = vunpack.c.l.b16 %v989
      %v1014 = vunpack.c.l.b16 %v990
      %v1015 = vunpack.c.h.b16 %v985
      %v1016 = vunpack.c.h.b16 %v986
      %v1017 = vunpack.c.h.b16 %v987
      %v1018 = vunpack.c.h.b16 %v988
      %v1019 = vunpack.c.h.b16 %v989
      %v1020 = vunpack.c.h.b16 %v990
      %v1021 = vunpack.c.l.b16 %v991
      %v1022 = vunpack.c.l.b16 %v992
      %v1023 = vunpack.c.l.b16 %v993
      %v1024 = vunpack.c.l.b16 %v994
      %v1025 = vunpack.c.l.b16 %v995
      %v1026 = vunpack.c.l.b16 %v996
      %v1027 = vunpack.c.h.b16 %v991
      %v1028 = vunpack.c.h.b16 %v992
      %v1029 = vunpack.c.h.b16 %v993
      %v1030 = vunpack.c.h.b16 %v994
      %v1031 = vunpack.c.h.b16 %v995
      %v1032 = vunpack.c.h.b16 %v996
      %v1033 = vpack.c.b16 %v1010, %v1009
      %v1034 = vpack.c.b16 %v1012, %v1011
      %v1035 = vpack.c.b16 %v1014, %v1013
      %v1036 = vpack.c.b16 %v1016, %v1015
      %v1037 = vpack.c.b16 %v1018, %v1017
      %v1038 = vpack.c.b16 %v1020, %v1019
      %v1039 = vpack.c.b16 %v1022, %v1021
      %v1040 = vpack.c.b16 %v1024, %v1023
      %v1041 = vpack.c.b16 %v1026, %v1025
      %v1042 = vpack.c.b16 %v1028, %v1027
      %v1043 = vpack.c.b16 %v1030, %v1029
      %v1044 = vpack.c.b16 %v1032, %v1031
      %1057 = vst [vmem:[#allocation8] sm:$0xff] %v1033
      %1058 = vst [vmem:[#allocation8 + $0x8] sm:$0xff] %v1034
      %1059 = vst [vmem:[#allocation8 + $0x10] sm:$0xff] %v1035
      %1060 = vst [vmem:[#allocation8 + $0x18] sm:$0xff] %v1036
      %1061 = vst [vmem:[#allocation8 + $0x20] sm:$0xff] %v1037
      %1062 = vst [vmem:[#allocation8 + $0x28] sm:$0xff] %v1038
      %1063 = vst [vmem:[#allocation8 + $0x30] sm:$0xff] %v1039
      %1064 = vst [vmem:[#allocation8 + $0x38] sm:$0xff] %v1040
      %1065 = vst [vmem:[#allocation8 + $0x40] sm:$0xff] %v1041
      %1066 = vst [vmem:[#allocation8 + $0x48] sm:$0xff] %v1042
      %1067 = vst [vmem:[#allocation8 + $0x50] sm:$0xff] %v1043
      %1068 = vst [vmem:[#allocation8 + $0x58] sm:$0xff] %v1044
    $region29: #{tpu_custom_call.1} parent=1 // pred_fallthru
      _
    // Predicated region
    $region30: #{tpu_custom_call.1} parent=1 // pred_check
      _
    $region31: #{tpu_custom_call.1} parent=1 // pred_check_branch
      %1070 = sbr.rel (0) target = $region33
    $region32: #{tpu_custom_call.1} parent=1 // pred_region
      %s1072 = ssub.s32 1536, 1536
      %1073 = vsyncadd [#allocation5], %s1072
      %s1074 = sshll.u32 [#allocation8], 4
      %s1075 = int_to_ptr.vmem [resolvable:$true] %s1074
      %1080 = dma.vmem_to_hbm [thread:$0]  %s1075, 1536, %s3, [#allocation5], 384, 384, 24
    $region33: #{tpu_custom_call.1} parent=1 // pred_fallthru
      _
    // Predicated region
    $region34: #{tpu_custom_call.1} parent=1 // pred_check
      _
    $region35: #{tpu_custom_call.1} parent=1 // pred_check_branch
      %1082 = sbr.rel (0) target = $region37
    $region36: #{tpu_custom_call.1} parent=1 // pred_region
      %1083 = dma.done [#allocation5], 1536
    $region37: #{tpu_custom_call.1} parent=1 // pred_fallthru
      _
    %1084 = vsyncpa [#allocation4], 1
    %1085 = vsyncpa [#allocation7], 1
    %1086 = vsyncpa [#allocation5], 1

</llo_original>
